<compile_context>
chip_gen: v7x
topology: tpu7x:2x2x1
jax: 0.10.0
libtpu: 0.0.40
codegen_flags: <defaults>
</compile_context>

<pallas_src>
import functools
import math

import jax
import jax.numpy as jnp
from jax import lax
from jax.experimental import pallas as pl
from jax.experimental.pallas import tpu as pltpu


def _cross_attn_kernel(img_ref, txt_ref, wq_ref, wk_ref, wv_ref, wo_ref,
                       b_qkv_ref, vecs_ref, out_ref, acc_ref,
                       *, nhead: int, scale: float, eps: float,
                       compute_dtype, approx_softmax: bool):
    img = img_ref[0]                                   # (tq, D) input dtype
    x_q = img.astype(compute_dtype)                    # (tq, D)
    x_kv = txt_ref[0].astype(compute_dtype)            # (Lk, D)

    acc_ref[...] = jnp.zeros_like(acc_ref)             # (tq, D) f32

    def head_body(h, carry):
        w_q = wq_ref[h]                                # (D, hd) compute dtype
        w_k = wk_ref[h]
        w_v = wv_ref[h]
        w_o = wo_ref[h]                                # (hd, D)
        b = b_qkv_ref[h]                               # (3, hd) f32

        # Per-head projections: full-depth K = D contractions on the MXU,
        # f32 accumulation.
        q = jnp.dot(x_q, w_q, preferred_element_type=jnp.float32) + b[0:1]
        k = jnp.dot(x_kv, w_k, preferred_element_type=jnp.float32) + b[1:2]
        v = jnp.dot(x_kv, w_v, preferred_element_type=jnp.float32) + b[2:3]

        # Scale q (tq, hd) instead of the (tq, Lk) scores.
        q = (q * scale).astype(compute_dtype)

        # scores = q @ k^T (contract head_dim), f32 accumulation.
        s = lax.dot_general(
            q, k.astype(compute_dtype),
            dimension_numbers=(((1,), (1,)), ((), ())),
            preferred_element_type=jnp.float32)        # (tq, Lk)

        # Softmax in f32 (max-subtracted); denom via EUP approx reciprocal.
        m = jnp.max(s, axis=-1, keepdims=True)
        p = jnp.exp(s - m)
        denom = jnp.sum(p, axis=-1, keepdims=True)
        inv = pl.reciprocal(denom, approx=approx_softmax)   # (tq, 1)

        ctx = jnp.dot(p.astype(compute_dtype), v.astype(compute_dtype),
                      preferred_element_type=jnp.float32) * inv  # (tq, hd)

        # Accumulate this head's slice of the output projection.
        acc_ref[...] += jnp.dot(ctx.astype(compute_dtype), w_o,
                                preferred_element_type=jnp.float32)  # (tq, D)
        return carry

    lax.fori_loop(0, nhead, head_body, 0)

    b_o = vecs_ref[0:1, :]                             # (1, D) f32
    gamma = vecs_ref[1:2, :]
    beta = vecs_ref[2:3, :]

    # residual (dropout = identity in eval) + LayerNorm, all f32.
    resid = img.astype(jnp.float32) + acc_ref[...] + b_o
    mean = jnp.mean(resid, axis=-1, keepdims=True)
    cent = resid - mean
    var = jnp.mean(cent * cent, axis=-1, keepdims=True)
    normed = cent * lax.rsqrt(var + eps)
    out_ref[0] = (normed * gamma + beta).astype(out_ref.dtype)


def _pick_q_tile(length: int, target: int = 256) -> int:
    """Largest multiple-of-8 divisor of `length` <= target (or the whole
    length when it is small / has no such divisor)."""
    if length <= target:
        return length
    t = target - (target % 8)
    while t >= 8:
        if length % t == 0:
            return t
        t -= 8
    return length


def cross_modal_attention(img_feats, txt_feats, params, *, nhead: int,
                          eps: float = 1e-5, compute_dtype=jnp.bfloat16,
                          approx_softmax: bool = True, q_tile: int = 256):
    """CrossModalAttention.forward: img_feats (B,Lq,D), txt_feats (B,Lk,D) -> (B,Lq,D)."""
    B, Lq, D = img_feats.shape
    Bk, Lk, Dk = txt_feats.shape
    assert B == Bk and D == Dk and D % nhead == 0
    hd = D // nhead

    wq, bq, wk, bk, wv, bv, wo, bo, gamma, beta = params

    # ---- wrapper-side (free) layout plumbing: head-major weight packing ----
    def split_cols(w):  # (D, D) -> (H, D, hd): head h owns output cols [h*hd,(h+1)*hd)
        return w.reshape(D, nhead, hd).transpose(1, 0, 2)

    wq_h = split_cols(wq).astype(compute_dtype)                  # (H, D, hd)
    wk_h = split_cols(wk).astype(compute_dtype)
    wv_h = split_cols(wv).astype(compute_dtype)
    wo_h = wo.reshape(nhead, hd, D).astype(compute_dtype)        # (H, hd, D)
    b_qkv = jnp.stack([bq.reshape(nhead, hd), bk.reshape(nhead, hd),
                       bv.reshape(nhead, hd)],
                      axis=1).astype(jnp.float32)                # (H, 3, hd)
    vecs = jnp.concatenate([bo.reshape(1, D), gamma.reshape(1, D),
                            beta.reshape(1, D)],
                           axis=0).astype(jnp.float32)           # (3, D)

    tq = _pick_q_tile(Lq, q_tile)
    n_q = Lq // tq
    scale = 1.0 / math.sqrt(hd)

    kernel = functools.partial(_cross_attn_kernel, nhead=nhead, scale=scale,
                               eps=eps, compute_dtype=compute_dtype,
                               approx_softmax=approx_softmax)

    return pl.pallas_call(
        kernel,
        out_shape=jax.ShapeDtypeStruct((B, Lq, D), img_feats.dtype),
        grid_spec=pltpu.PrefetchScalarGridSpec(
            num_scalar_prefetch=0,
            grid=(B, n_q),
            in_specs=[
                pl.BlockSpec((1, tq, D), lambda b, qi: (b, qi, 0)),    # img tile
                pl.BlockSpec((1, Lk, D), lambda b, qi: (b, 0, 0)),     # txt (full Lk)
                pl.BlockSpec((nhead, D, hd), lambda b, qi: (0, 0, 0)),  # Wq (head-major)
                pl.BlockSpec((nhead, D, hd), lambda b, qi: (0, 0, 0)),  # Wk
                pl.BlockSpec((nhead, D, hd), lambda b, qi: (0, 0, 0)),  # Wv
                pl.BlockSpec((nhead, hd, D), lambda b, qi: (0, 0, 0)),  # Wo
                pl.BlockSpec((nhead, 3, hd), lambda b, qi: (0, 0, 0)),  # bq/bk/bv
                pl.BlockSpec((3, D), lambda b, qi: (0, 0)),             # [bo; gamma; beta]
            ],
            out_specs=pl.BlockSpec((1, tq, D), lambda b, qi: (b, qi, 0)),
            scratch_shapes=[pltpu.VMEM((tq, D), jnp.float32)],
        ),
        compiler_params=pltpu.CompilerParams(
            dimension_semantics=("parallel", "parallel"),
            vmem_limit_bytes=32 * 1024 * 1024,
        ),
    )(img_feats, txt_feats, wq_h, wk_h, wv_h, wo_h, b_qkv, vecs)


def dual_cross_modal_attention(img_feats, txt_feats, params_img2txt,
                               params_txt2img, *, nhead: int, eps: float = 1e-5,
                               **kw):
    """DualCrossModalAttention.forward: two fused cross-attention blocks."""
    out_img = cross_modal_attention(img_feats, txt_feats, params_img2txt,
                                    nhead=nhead, eps=eps, **kw)
    out_txt = cross_modal_attention(txt_feats, out_img, params_txt2img,
                                    nhead=nhead, eps=eps, **kw)
    return out_img, out_txt


def multimodal_pretrain_head(img_feats, txt_feats, params_img2txt,
                             params_txt2img, w_cls, b_cls, *, nhead: int, **kw):
    """MultiModalModel_pretrain 'dual_cross_attention' fusion branch (backbones
    excluded): dual cross-attention -> take token 0 of each stream -> concat
    -> classifier Linear (plain JAX; tiny)."""
    out_img, out_txt = dual_cross_modal_attention(
        img_feats, txt_feats, params_img2txt, params_txt2img, nhead=nhead, **kw)
    fused = jnp.concatenate([out_img[:, 0, :], out_txt[:, 0, :]], axis=-1)
    return fused @ w_cls + b_cls


def _reference(img, txt, params, nhead, eps=1e-5):
    wq, bq, wk, bk, wv, bv, wo, bo, gamma, beta = params
    B, Lq, D = img.shape
    Lk = txt.shape[1]
    hd = D // nhead
    q = img @ wq + bq
    k = txt @ wk + bk
    v = txt @ wv + bv
    q = q.reshape(B, Lq, nhead, hd).transpose(0, 2, 1, 3)
    k = k.reshape(B, Lk, nhead, hd).transpose(0, 2, 1, 3)
    v = v.reshape(B, Lk, nhead, hd).transpose(0, 2, 1, 3)
    s = jnp.einsum("bhqd,bhkd->bhqk", q, k) / math.sqrt(hd)
    a = jax.nn.softmax(s, axis=-1)
    ctx = jnp.einsum("bhqk,bhkd->bhqd", a, v).transpose(0, 2, 1, 3).reshape(B, Lq, D)
    o = ctx @ wo + bo
    resid = img + o
    mean = resid.mean(-1, keepdims=True)
    var = ((resid - mean) ** 2).mean(-1, keepdims=True)
    return (resid - mean) * jax.lax.rsqrt(var + eps) * gamma + beta


if __name__ == "__main__":
    B, Lq, Lk, D, nhead = 2, 8, 8, 32, 4

    key = jax.random.PRNGKey(0)
    ks = jax.random.split(key, 12)
    w_scale = 1.0 / math.sqrt(D)
    wq = jax.random.normal(ks[0], (D, D), jnp.float32) * w_scale
    bq = jax.random.normal(ks[1], (1, D), jnp.float32) * 0.01
    wk = jax.random.normal(ks[2], (D, D), jnp.float32) * w_scale
    bk = jax.random.normal(ks[3], (1, D), jnp.float32) * 0.01
    wv = jax.random.normal(ks[4], (D, D), jnp.float32) * w_scale
    bv = jax.random.normal(ks[5], (1, D), jnp.float32) * 0.01
    wo = jax.random.normal(ks[6], (D, D), jnp.float32) * w_scale
    bo = jax.random.normal(ks[7], (1, D), jnp.float32) * 0.01
    gamma = jnp.ones((1, D), jnp.float32)
    beta = jnp.zeros((1, D), jnp.float32)
    params = (wq, bq, wk, bk, wv, bv, wo, bo, gamma, beta)

    img_feats = jax.random.normal(ks[8], (B, Lq, D), jnp.float32)
    txt_feats = jax.random.normal(ks[9], (B, Lk, D), jnp.float32)

    ref = _reference(img_feats, txt_feats, params, nhead)

    # 1) Exact path (f32 MXU operands, exact reciprocal): tight tolerance.
    out_f32 = cross_modal_attention(img_feats, txt_feats, params, nhead=nhead,
                                    compute_dtype=jnp.float32,
                                    approx_softmax=False)
    out_f32 = jax.block_until_ready(out_f32)
    assert out_f32.shape == (B, Lq, D)
    assert jnp.allclose(out_f32, ref, atol=1e-4, rtol=1e-4)

    # 2) Production path (bf16 MXU operands + approx softmax reciprocal).
    out_bf16 = cross_modal_attention(img_feats, txt_feats, params, nhead=nhead)
    out_bf16 = jax.block_until_ready(out_bf16)
    assert out_bf16.shape == (B, Lq, D)
    assert jnp.allclose(out_bf16, ref, atol=5e-2, rtol=5e-2)

    # 3) Dual cross-attention composition, checked on the exact path.
    out_img, out_txt = dual_cross_modal_attention(
        img_feats, txt_feats, params, params, nhead=nhead,
        compute_dtype=jnp.float32, approx_softmax=False)
    out_img = jax.block_until_ready(out_img)
    out_txt = jax.block_until_ready(out_txt)
    ref_img = _reference(img_feats, txt_feats, params, nhead)
    ref_txt = _reference(txt_feats, ref_img, params, nhead)
    assert jnp.allclose(out_img, ref_img, atol=1e-4, rtol=1e-4)
    assert jnp.allclose(out_txt, ref_txt, atol=1e-4, rtol=1e-4)

    # 4) Module-shaped flow: img_feats is (B, 1, D) in MultiModalModel_pretrain
    #    (image backbone output unsqueezed), exercising the Lq=1 / Lk=1 paths,
    #    plus the concat + classifier head.
    img1 = jax.random.normal(ks[10], (B, 1, D), jnp.float32)
    num_classes = 3
    w_cls = jax.random.normal(ks[11], (2 * D, num_classes), jnp.float32) * w_scale
    b_cls = jnp.zeros((num_classes,), jnp.float32)
    logits = multimodal_pretrain_head(img1, txt_feats, params, params,
                                      w_cls, b_cls, nhead=nhead,
                                      compute_dtype=jnp.float32,
                                      approx_softmax=False)
    logits = jax.block_until_ready(logits)
    ref_i = _reference(img1, txt_feats, params, nhead)
    ref_t = _reference(txt_feats, ref_i, params, nhead)
    ref_logits = jnp.concatenate([ref_i[:, 0, :], ref_t[:, 0, :]], axis=-1) @ w_cls + b_cls
    assert logits.shape == (B, num_classes)
    assert jnp.allclose(logits, ref_logits, atol=1e-4, rtol=1e-4)

    print("KERNEL_OK")
</pallas_src>

<mosaic_0001>
module attributes {stable_mosaic.version = 11 : i64} {
  func.func @_cross_attn_kernel(%arg0: i32, %arg1: i32, %arg2: memref<1x8x32xf32, #tpu.memory_space<vmem>>, %arg3: memref<1x8x32xf32, #tpu.memory_space<vmem>>, %arg4: memref<4x32x8xf32, #tpu.memory_space<vmem>>, %arg5: memref<4x32x8xf32, #tpu.memory_space<vmem>>, %arg6: memref<4x32x8xf32, #tpu.memory_space<vmem>>, %arg7: memref<4x8x32xf32, #tpu.memory_space<vmem>>, %arg8: memref<4x3x8xf32, #tpu.memory_space<vmem>>, %arg9: memref<3x32xf32, #tpu.memory_space<vmem>>, %arg10: memref<1x8x32xf32, #tpu.memory_space<vmem>>, %arg11: memref<8x32xf32, #tpu.memory_space<vmem>>) attributes {dimension_semantics = [#tpu.dimension_semantics<parallel>, #tpu.dimension_semantics<parallel>], iteration_bounds = array<i64: 2, 1>, scalar_prefetch = 0 : i64, scratch_operands = 1 : i64, tpu.core_type = #tpu.core_type<tc>, window_params = [{transform_indices = @transform_0, window_bounds = array<i64: 1, 8, 32>}, {transform_indices = @transform_1, window_bounds = array<i64: 1, 8, 32>}, {pipeline_mode = #tpu.pipeline_mode<synchronous>, transform_indices = @transform_2, window_bounds = array<i64: 4, 32, 8>}, {pipeline_mode = #tpu.pipeline_mode<synchronous>, transform_indices = @transform_3, window_bounds = array<i64: 4, 32, 8>}, {pipeline_mode = #tpu.pipeline_mode<synchronous>, transform_indices = @transform_4, window_bounds = array<i64: 4, 32, 8>}, {pipeline_mode = #tpu.pipeline_mode<synchronous>, transform_indices = @transform_5, window_bounds = array<i64: 4, 8, 32>}, {pipeline_mode = #tpu.pipeline_mode<synchronous>, transform_indices = @transform_6, window_bounds = array<i64: 4, 3, 8>}, {pipeline_mode = #tpu.pipeline_mode<synchronous>, transform_indices = @transform_7, window_bounds = array<i64: 3, 32>}, {transform_indices = @transform_8, window_bounds = array<i64: 1, 8, 32>}]} {
    %c0 = arith.constant 0 : index
    %c0_0 = arith.constant 0 : index
    %c0_1 = arith.constant 0 : index
    %0 = vector.load %arg2[%c0, %c0_0, %c0_1] : memref<1x8x32xf32, #tpu.memory_space<vmem>>, vector<1x8x32xf32>
    %1 = vector.shape_cast %0 : vector<1x8x32xf32> to vector<8x32xf32>
    %c0_2 = arith.constant 0 : index
    %c0_3 = arith.constant 0 : index
    %c0_4 = arith.constant 0 : index
    %2 = vector.load %arg3[%c0_2, %c0_3, %c0_4] : memref<1x8x32xf32, #tpu.memory_space<vmem>>, vector<1x8x32xf32>
    %3 = vector.shape_cast %2 : vector<1x8x32xf32> to vector<8x32xf32>
    %cst = arith.constant 0.000000e+00 : f32
    %4 = vector.broadcast %cst : f32 to vector<8x32xf32>
    %c0_5 = arith.constant 0 : index
    %c0_6 = arith.constant 0 : index
    %5 = vector.load %arg11[%c0_5, %c0_6] : memref<8x32xf32, #tpu.memory_space<vmem>>, vector<8x32xf32>
    tpu.vector_store %arg11[%c0_5, %c0_6], %4 {strides = array<i32>} : memref<8x32xf32, #tpu.memory_space<vmem>>, vector<8x32xf32>,
    %c0_i32 = arith.constant 0 : i32
    %c4_i32 = arith.constant 4 : i32
    %6 = arith.addi %c0_i32, %c4_i32 : i32
    %c1_i32 = arith.constant 1 : i32
    scf.for %arg12 = %c0_i32 to %6 step %c1_i32  : i32 {
      %37 = arith.index_cast %arg12 : i32 to index
      %c0_22 = arith.constant 0 : index
      %c0_23 = arith.constant 0 : index
      %38 = vector.load %arg4[%37, %c0_22, %c0_23] : memref<4x32x8xf32, #tpu.memory_space<vmem>>, vector<1x32x8xf32>
      %39 = vector.shape_cast %38 : vector<1x32x8xf32> to vector<32x8xf32>
      %40 = arith.index_cast %arg12 : i32 to index
      %c0_24 = arith.constant 0 : index
      %c0_25 = arith.constant 0 : index
      %41 = vector.load %arg5[%40, %c0_24, %c0_25] : memref<4x32x8xf32, #tpu.memory_space<vmem>>, vector<1x32x8xf32>
      %42 = vector.shape_cast %41 : vector<1x32x8xf32> to vector<32x8xf32>
      %43 = arith.index_cast %arg12 : i32 to index
      %c0_26 = arith.constant 0 : index
      %c0_27 = arith.constant 0 : index
      %44 = vector.load %arg6[%43, %c0_26, %c0_27] : memref<4x32x8xf32, #tpu.memory_space<vmem>>, vector<1x32x8xf32>
      %45 = vector.shape_cast %44 : vector<1x32x8xf32> to vector<32x8xf32>
      %46 = arith.index_cast %arg12 : i32 to index
      %c0_28 = arith.constant 0 : index
      %c0_29 = arith.constant 0 : index
      %47 = vector.load %arg7[%46, %c0_28, %c0_29] : memref<4x8x32xf32, #tpu.memory_space<vmem>>, vector<1x8x32xf32>
      %48 = vector.shape_cast %47 : vector<1x8x32xf32> to vector<8x32xf32>
      %49 = arith.index_cast %arg12 : i32 to index
      %c0_30 = arith.constant 0 : index
      %c0_31 = arith.constant 0 : index
      %50 = vector.load %arg8[%49, %c0_30, %c0_31] : memref<4x3x8xf32, #tpu.memory_space<vmem>>, vector<1x3x8xf32>
      %51 = vector.shape_cast %50 : vector<1x3x8xf32> to vector<3x8xf32>
      %cst_32 = arith.constant dense<0.000000e+00> : vector<8x8xf32>
      %52 = tpu.matmul %1, %39, %cst_32 {dimension_numbers = #tpu.dot_dimension_numbers<[1], [0], [0], [1], [0, 0, 1, 1], [], []>} : vector<8x32xf32>, vector<32x8xf32>, vector<8x8xf32> -> vector<8x8xf32>
      %53 = vector.extract_strided_slice %51 {offsets = [0, 0], sizes = [1, 8], strides = [1, 1]} : vector<3x8xf32> to vector<1x8xf32>
      %54 = vector.broadcast %53 : vector<1x8xf32> to vector<8x8xf32>
      %55 = arith.addf %52, %54 : vector<8x8xf32>
      %cst_33 = arith.constant dense<0.000000e+00> : vector<8x8xf32>
      %56 = tpu.matmul %3, %42, %cst_33 {dimension_numbers = #tpu.dot_dimension_numbers<[1], [0], [0], [1], [0, 0, 1, 1], [], []>} : vector<8x32xf32>, vector<32x8xf32>, vector<8x8xf32> -> vector<8x8xf32>
      %57 = vector.extract_strided_slice %51 {offsets = [1, 0], sizes = [1, 8], strides = [1, 1]} : vector<3x8xf32> to vector<1x8xf32>
      %58 = vector.broadcast %57 : vector<1x8xf32> to vector<8x8xf32>
      %59 = arith.addf %56, %58 : vector<8x8xf32>
      %cst_34 = arith.constant dense<0.000000e+00> : vector<8x8xf32>
      %60 = tpu.matmul %3, %45, %cst_34 {dimension_numbers = #tpu.dot_dimension_numbers<[1], [0], [0], [1], [0, 0, 1, 1], [], []>} : vector<8x32xf32>, vector<32x8xf32>, vector<8x8xf32> -> vector<8x8xf32>
      %61 = vector.extract_strided_slice %51 {offsets = [2, 0], sizes = [1, 8], strides = [1, 1]} : vector<3x8xf32> to vector<1x8xf32>
      %62 = vector.broadcast %61 : vector<1x8xf32> to vector<8x8xf32>
      %63 = arith.addf %60, %62 : vector<8x8xf32>
      %cst_35 = arith.constant 0.353553385 : f32
      %64 = vector.broadcast %cst_35 : f32 to vector<8x8xf32>
      %65 = arith.mulf %55, %64 : vector<8x8xf32>
      %cst_36 = arith.constant dense<0.000000e+00> : vector<8x8xf32>
      %66 = tpu.matmul %65, %59, %cst_36 {dimension_numbers = #tpu.dot_dimension_numbers<[1], [1], [0], [0], [0, 0, 1, 0], [], []>} : vector<8x8xf32>, vector<8x8xf32>, vector<8x8xf32> -> vector<8x8xf32>
      %cst_37 = arith.constant dense<0xFF800000> : vector<8xf32>
      %67 = vector.multi_reduction <maximumf>, %66, %cst_37 [1] : vector<8x8xf32> to vector<8xf32>
      %68 = vector.shape_cast %67 : vector<8xf32> to vector<8x1xf32>
      %69 = vector.broadcast %68 : vector<8x1xf32> to vector<8x8xf32>
      %70 = arith.subf %66, %69 : vector<8x8xf32>
      %71 = math.exp %70 : vector<8x8xf32>
      %cst_38 = arith.constant dense<0.000000e+00> : vector<8xf32>
      %72 = vector.multi_reduction <add>, %71, %cst_38 [1] : vector<8x8xf32> to vector<8xf32>
      %73 = vector.shape_cast %72 : vector<8xf32> to vector<8x1xf32>
      %74 = tpu.reciprocal %73 : vector<8x1xf32> -> vector<8x1xf32>
      %cst_39 = arith.constant dense<0.000000e+00> : vector<8x8xf32>
      %75 = tpu.matmul %71, %63, %cst_39 {dimension_numbers = #tpu.dot_dimension_numbers<[1], [0], [0], [1], [0, 0, 1, 1], [], []>} : vector<8x8xf32>, vector<8x8xf32>, vector<8x8xf32> -> vector<8x8xf32>
      %76 = vector.broadcast %74 : vector<8x1xf32> to vector<8x8xf32>
      %77 = arith.mulf %75, %76 : vector<8x8xf32>
      %c0_40 = arith.constant 0 : index
      %c0_41 = arith.constant 0 : index
      %78 = vector.load %arg11[%c0_40, %c0_41] : memref<8x32xf32, #tpu.memory_space<vmem>>, vector<8x32xf32>
      %cst_42 = arith.constant dense<0.000000e+00> : vector<8x32xf32>
      %79 = tpu.matmul %77, %48, %cst_42 {dimension_numbers = #tpu.dot_dimension_numbers<[1], [0], [0], [1], [0, 0, 1, 1], [], []>} : vector<8x8xf32>, vector<8x32xf32>, vector<8x32xf32> -> vector<8x32xf32>
      %80 = arith.addf %78, %79 : vector<8x32xf32>
      %c0_43 = arith.constant 0 : index
      %c0_44 = arith.constant 0 : index
      %81 = vector.load %arg11[%c0_43, %c0_44] : memref<8x32xf32, #tpu.memory_space<vmem>>, vector<8x32xf32>
      tpu.vector_store %arg11[%c0_43, %c0_44], %80 {strides = array<i32>} : memref<8x32xf32, #tpu.memory_space<vmem>>, vector<8x32xf32>,
    }
    %c4_i32_7 = arith.constant 4 : i32
    %c0_8 = arith.constant 0 : index
    %c0_9 = arith.constant 0 : index
    %7 = vector.load %arg9[%c0_8, %c0_9] : memref<3x32xf32, #tpu.memory_space<vmem>>, vector<1x32xf32>
    %c1 = arith.constant 1 : index
    %c0_10 = arith.constant 0 : index
    %8 = vector.load %arg9[%c1, %c0_10] : memref<3x32xf32, #tpu.memory_space<vmem>>, vector<1x32xf32>
    %c2 = arith.constant 2 : index
    %c0_11 = arith.constant 0 : index
    %9 = vector.load %arg9[%c2, %c0_11] : memref<3x32xf32, #tpu.memory_space<vmem>>, vector<1x32xf32>
    %c0_12 = arith.constant 0 : index
    %c0_13 = arith.constant 0 : index
    %10 = vector.load %arg11[%c0_12, %c0_13] : memref<8x32xf32, #tpu.memory_space<vmem>>, vector<8x32xf32>
    %11 = arith.addf %1, %10 : vector<8x32xf32>
    %12 = vector.broadcast %7 : vector<1x32xf32> to vector<8x32xf32>
    %13 = arith.addf %11, %12 : vector<8x32xf32>
    %cst_14 = arith.constant dense<0.000000e+00> : vector<8xf32>
    %14 = vector.multi_reduction <add>, %13, %cst_14 [1] : vector<8x32xf32> to vector<8xf32>
    %15 = vector.shape_cast %14 : vector<8xf32> to vector<8x1xf32>
    %cst_15 = arith.constant 3.200000e+01 : f32
    %16 = vector.broadcast %cst_15 : f32 to vector<8x1xf32>
    %17 = arith.divf %15, %16 : vector<8x1xf32>
    %18 = vector.broadcast %17 : vector<8x1xf32> to vector<8x32xf32>
    %19 = arith.subf %13, %18 : vector<8x32xf32>
    %20 = arith.mulf %19, %19 : vector<8x32xf32>
    %cst_16 = arith.constant dense<0.000000e+00> : vector<8xf32>
    %21 = vector.multi_reduction <add>, %20, %cst_16 [1] : vector<8x32xf32> to vector<8xf32>
    %22 = vector.shape_cast %21 : vector<8xf32> to vector<8x1xf32>
    %cst_17 = arith.constant 3.200000e+01 : f32
    %23 = vector.broadcast %cst_17 : f32 to vector<8x1xf32>
    %24 = arith.divf %22, %23 : vector<8x1xf32>
    %cst_18 = arith.constant 9.99999974E-6 : f32
    %25 = vector.broadcast %cst_18 : f32 to vector<8x1xf32>
    %26 = arith.addf %24, %25 : vector<8x1xf32>
    %27 = math.rsqrt %26 : vector<8x1xf32>
    %28 = vector.broadcast %27 : vector<8x1xf32> to vector<8x32xf32>
    %29 = arith.mulf %19, %28 : vector<8x32xf32>
    %30 = vector.broadcast %8 : vector<1x32xf32> to vector<8x32xf32>
    %31 = arith.mulf %29, %30 : vector<8x32xf32>
    %32 = vector.broadcast %9 : vector<1x32xf32> to vector<8x32xf32>
    %33 = arith.addf %31, %32 : vector<8x32xf32>
    %c0_19 = arith.constant 0 : index
    %c0_20 = arith.constant 0 : index
    %c0_21 = arith.constant 0 : index
    %34 = vector.load %arg10[%c0_19, %c0_20, %c0_21] : memref<1x8x32xf32, #tpu.memory_space<vmem>>, vector<1x8x32xf32>
    %35 = vector.shape_cast %34 : vector<1x8x32xf32> to vector<8x32xf32>
    %36 = vector.shape_cast %33 : vector<8x32xf32> to vector<1x8x32xf32>
    tpu.vector_store %arg10[%c0_19, %c0_20, %c0_21], %36 {strides = array<i32>} : memref<1x8x32xf32, #tpu.memory_space<vmem>>, vector<1x8x32xf32>,
    return
  }
  func.func @transform_0(%arg0: i32, %arg1: i32) -> (i32, i32, i32) {
    %c0_i32 = arith.constant 0 : i32
    %c0_i32_0 = arith.constant 0 : i32
    return %arg0, %arg1, %c0_i32 : i32, i32, i32
  }
  func.func @transform_1(%arg0: i32, %arg1: i32) -> (i32, i32, i32) {
    %c0_i32 = arith.constant 0 : i32
    %c0_i32_0 = arith.constant 0 : i32
    %c0_i32_1 = arith.constant 0 : i32
    return %arg0, %c0_i32, %c0_i32_0 : i32, i32, i32
  }
  func.func @transform_2(%arg0: i32, %arg1: i32) -> (i32, i32, i32) {
    %c0_i32 = arith.constant 0 : i32
    %c0_i32_0 = arith.constant 0 : i32
    %c0_i32_1 = arith.constant 0 : i32
    %c0_i32_2 = arith.constant 0 : i32
    return %c0_i32, %c0_i32_0, %c0_i32_1 : i32, i32, i32
  }
  func.func @transform_3(%arg0: i32, %arg1: i32) -> (i32, i32, i32) {
    %c0_i32 = arith.constant 0 : i32
    %c0_i32_0 = arith.constant 0 : i32
    %c0_i32_1 = arith.constant 0 : i32
    %c0_i32_2 = arith.constant 0 : i32
    return %c0_i32, %c0_i32_0, %c0_i32_1 : i32, i32, i32
  }
  func.func @transform_4(%arg0: i32, %arg1: i32) -> (i32, i32, i32) {
    %c0_i32 = arith.constant 0 : i32
    %c0_i32_0 = arith.constant 0 : i32
    %c0_i32_1 = arith.constant 0 : i32
    %c0_i32_2 = arith.constant 0 : i32
    return %c0_i32, %c0_i32_0, %c0_i32_1 : i32, i32, i32
  }
  func.func @transform_5(%arg0: i32, %arg1: i32) -> (i32, i32, i32) {
    %c0_i32 = arith.constant 0 : i32
    %c0_i32_0 = arith.constant 0 : i32
    %c0_i32_1 = arith.constant 0 : i32
    %c0_i32_2 = arith.constant 0 : i32
    return %c0_i32, %c0_i32_0, %c0_i32_1 : i32, i32, i32
  }
  func.func @transform_6(%arg0: i32, %arg1: i32) -> (i32, i32, i32) {
    %c0_i32 = arith.constant 0 : i32
    %c0_i32_0 = arith.constant 0 : i32
    %c0_i32_1 = arith.constant 0 : i32
    %c0_i32_2 = arith.constant 0 : i32
    return %c0_i32, %c0_i32_0, %c0_i32_1 : i32, i32, i32
  }
  func.func @transform_7(%arg0: i32, %arg1: i32) -> (i32, i32) {
    %c0_i32 = arith.constant 0 : i32
    %c0_i32_0 = arith.constant 0 : i32
    %c0_i32_1 = arith.constant 0 : i32
    return %c0_i32, %c0_i32_0 : i32, i32
  }
  func.func @transform_8(%arg0: i32, %arg1: i32) -> (i32, i32, i32) {
    %c0_i32 = arith.constant 0 : i32
    %c0_i32_0 = arith.constant 0 : i32
    return %arg0, %arg1, %c0_i32 : i32, i32, i32
  }
}

</mosaic_0001>

<llo_original>
// kernel: tpu_custom_call.1
$region0: #{tpu_custom_call.1}
  #allocation0 [shape = 'u32[]', space=smem, size = 0x4, offset = 0x4, fixed_abs, tag = 'smem constant byte address 0x4 - core index']
  #allocation1 [shape = 'u32[144,128]{1,0:T(1,128)}', space=vmem, size = 0x12000, scoped, tag = 'internal scratch']
  #allocation2 [shape = 'f32[8,32]{1,0:T(8,128)}', space=vmem, size = 0x1000, scoped, tag = 'scratch operand']
  %s0 = inlined_call_operand.vmem [shape: f32[2,8,32], index: 0, kind: input, shape index: {}]
  %s1 = inlined_call_operand.vmem [shape: f32[2,8,32], index: 1, kind: input, shape index: {}]
  %s2 = inlined_call_operand.vmem [shape: f32[4,32,8], index: 2, kind: input, shape index: {}]
  %s3 = inlined_call_operand.vmem [shape: f32[4,32,8], index: 3, kind: input, shape index: {}]
  %s4 = inlined_call_operand.vmem [shape: f32[4,32,8], index: 4, kind: input, shape index: {}]
  %s5 = inlined_call_operand.vmem [shape: f32[4,8,32], index: 5, kind: input, shape index: {}]
  %s6 = inlined_call_operand.vmem [shape: f32[4,3,8], index: 6, kind: input, shape index: {}]
  %s7 = inlined_call_operand.vmem [shape: f32[3,32], index: 7, kind: input, shape index: {}]
  %s8 = inlined_call_operand.hbm [shape: f32[2,8,32], index: 8, kind: output, shape index: {}]
  %s9 = sld [smem:[#allocation0]]
  $region72: #{tpu_custom_call.1} parent=0
    _
  %s11 = ssub.s32 1, %s9
  %s12 = scalar_select 0, %s11, %s9
  $region1: #{tpu_custom_call.1} parent=0
    #allocation3 [shape = 'u8[8192]{0}', space=vmem, size = 0x2000, scoped, tag = 'output window, operand 0']
    #allocation4 [shape = 's32[2]{0}', space=sflag, size = 0x8, scoped, tag = 'scoped memory for tpu_custom_call.1']
    %13 = vsyncpa [#allocation4], 0
    %s14 = scalar_lea.sflag [#allocation4], 1
    %15 = vsyncpa %s14, 0
    loop: start=0, step=1, limit=4
    $region2: #{tpu_custom_call.1} parent=1 // loop_pre_header
      _
    $region3: #{tpu_custom_call.1} parent=1 // loop_header
      %s17 = sphi 0, %s21
      %p18 = scmp.ge.s32.totalorder %s17, 4
      %s24 = sphi 0, %s36
      %s25 = sphi 0, %s32
      %s26 = sphi 0, %s24
      %s27 = sphi 0, %s25
      %s28 = sphi 0, %s26
      %s29 = sphi 0, %s27
      %s41 = sphi 0, %s43
      %s44 = sphi 0, %s41
      %s45 = sphi 0, %s44
      %s61 = sphi 0, %s45
      %s67 = sphi 0, %s69
      %s70 = sphi 0, %s67
      %s71 = sphi 0, %s70
      %s87 = sphi 0, %s71
      %s91 = sphi 0, %s91
      %s93 = sphi 0, %s91
      %s94 = sphi 0, %s93
      %s108 = sphi 0, %s94
      %s112 = sphi 0, %s112
      %s114 = sphi 0, %s112
      %s115 = sphi 0, %s114
      %s129 = sphi 0, %s115
      %s133 = sphi 0, %s133
      %s135 = sphi 0, %s133
      %s136 = sphi 0, %s135
      %s150 = sphi 0, %s136
      %s154 = sphi 0, %s154
      %s156 = sphi 0, %s154
      %s157 = sphi 0, %s156
      %s171 = sphi 0, %s157
      %s175 = sphi 0, %s175
      %s177 = sphi 0, %s175
      %s178 = sphi 0, %s177
      %s192 = sphi 0, %s178
      %s196 = sphi 0, %s196
      %s198 = sphi 0, %s196
      %s199 = sphi 0, %s198
      %s213 = sphi 0, %s199
      %s221 = sphi 0, %s223
      %s224 = sphi 0, %s221
      %s225 = sphi 0, %s224
      %s241 = sphi 0, %s225
    $region4: #{tpu_custom_call.1} parent=1 // loop_header_branch
      %20 = sbr.rel (%p18) target = $region8
    $region5: #{tpu_custom_call.1} parent=1 // loop_body
      %s22 = ssub.s32 %s17, 1
      %s23 = ssub.s32 %s17, 2
      %s30 = sadd.s32 1, %s25
      %p31 = scmp.ge.s32.totalorder %s30, 1
      %s32 = scalar_select %p31, 0, %s30
      %s33 = sadd.s32 1, %s24
      %s34 = scalar_select %p31, %s33, %s24
      %p35 = scmp.ge.s32.totalorder %s34, 2
      %s36 = scalar_select %p35, 0, %s34
      %s37 = ssub.s32 %s24, %s36
      %s38 = ssub.s32 %s25, %s32
      %s39 = sor.u32 %s37, %s38
      %p40 = scmp.eq.s32.totalorder %s39, 0
      %s42 = sadd.s32 %s41, 1
      %s43 = scalar_select %p40, %s41, %s42
      %p46 = pneg %p40
      %p47 = scmp.eq.s32.totalorder %s17, 1
      %p48 = por %p46, %p47
      %p49 = scmp.ne.s32.totalorder %s41, %s44
      %p50 = scmp.eq.s32.totalorder %s17, 0
      %p51 = por %p49, %p50
      %p52 = scmp.ne.s32.totalorder %s41, %s44
      %p53 = scmp.eq.s32.totalorder %s22, 1
      %p54 = por %p52, %p53
      %p55 = scmp.ne.s32.totalorder %s44, %s45
      %p56 = scmp.eq.s32.totalorder %s22, 0
      %p57 = por %p55, %p56
      %p58 = scmp.ne.s32.totalorder %s44, %s45
      %p59 = scmp.eq.s32.totalorder %s23, 1
      %p60 = por %p58, %p59
      %p62 = scmp.ne.s32.totalorder %s45, %s61
      %p63 = scmp.eq.s32.totalorder %s23, 0
      %p64 = por %p62, %p63
      %s65 = ssub.s32 %s24, %s36
      %p66 = scmp.eq.s32.totalorder %s65, 0
      %s68 = sadd.s32 %s67, 1
      %s69 = scalar_select %p66, %s67, %s68
      %p72 = pneg %p66
      %p73 = scmp.eq.s32.totalorder %s17, 1
      %p74 = por %p72, %p73
      %p75 = scmp.ne.s32.totalorder %s67, %s70
      %p76 = scmp.eq.s32.totalorder %s17, 0
      %p77 = por %p75, %p76
      %p78 = scmp.ne.s32.totalorder %s67, %s70
      %p79 = scmp.eq.s32.totalorder %s22, 1
      %p80 = por %p78, %p79
      %p81 = scmp.ne.s32.totalorder %s70, %s71
      %p82 = scmp.eq.s32.totalorder %s22, 0
      %p83 = por %p81, %p82
      %p84 = scmp.ne.s32.totalorder %s70, %s71
      %p85 = scmp.eq.s32.totalorder %s23, 1
      %p86 = por %p84, %p85
      %p88 = scmp.ne.s32.totalorder %s71, %s87
      %p89 = scmp.eq.s32.totalorder %s23, 0
      %p90 = por %p88, %p89
      %s92 = sadd.s32 %s91, 1
      %p95 = scmp.eq.s32.totalorder %s17, 1
      %p96 = scmp.ne.s32.totalorder %s91, %s93
      %p97 = scmp.eq.s32.totalorder %s17, 0
      %p98 = por %p96, %p97
      %p99 = scmp.ne.s32.totalorder %s91, %s93
      %p100 = scmp.eq.s32.totalorder %s22, 1
      %p101 = por %p99, %p100
      %p102 = scmp.ne.s32.totalorder %s93, %s94
      %p103 = scmp.eq.s32.totalorder %s22, 0
      %p104 = por %p102, %p103
      %p105 = scmp.ne.s32.totalorder %s93, %s94
      %p106 = scmp.eq.s32.totalorder %s23, 1
      %p107 = por %p105, %p106
      %p109 = scmp.ne.s32.totalorder %s94, %s108
      %p110 = scmp.eq.s32.totalorder %s23, 0
      %p111 = por %p109, %p110
      %s113 = sadd.s32 %s112, 1
      %p116 = scmp.eq.s32.totalorder %s17, 1
      %p117 = scmp.ne.s32.totalorder %s112, %s114
      %p118 = scmp.eq.s32.totalorder %s17, 0
      %p119 = por %p117, %p118
      %p120 = scmp.ne.s32.totalorder %s112, %s114
      %p121 = scmp.eq.s32.totalorder %s22, 1
      %p122 = por %p120, %p121
      %p123 = scmp.ne.s32.totalorder %s114, %s115
      %p124 = scmp.eq.s32.totalorder %s22, 0
      %p125 = por %p123, %p124
      %p126 = scmp.ne.s32.totalorder %s114, %s115
      %p127 = scmp.eq.s32.totalorder %s23, 1
      %p128 = por %p126, %p127
      %p130 = scmp.ne.s32.totalorder %s115, %s129
      %p131 = scmp.eq.s32.totalorder %s23, 0
      %p132 = por %p130, %p131
      %s134 = sadd.s32 %s133, 1
      %p137 = scmp.eq.s32.totalorder %s17, 1
      %p138 = scmp.ne.s32.totalorder %s133, %s135
      %p139 = scmp.eq.s32.totalorder %s17, 0
      %p140 = por %p138, %p139
      %p141 = scmp.ne.s32.totalorder %s133, %s135
      %p142 = scmp.eq.s32.totalorder %s22, 1
      %p143 = por %p141, %p142
      %p144 = scmp.ne.s32.totalorder %s135, %s136
      %p145 = scmp.eq.s32.totalorder %s22, 0
      %p146 = por %p144, %p145
      %p147 = scmp.ne.s32.totalorder %s135, %s136
      %p148 = scmp.eq.s32.totalorder %s23, 1
      %p149 = por %p147, %p148
      %p151 = scmp.ne.s32.totalorder %s136, %s150
      %p152 = scmp.eq.s32.totalorder %s23, 0
      %p153 = por %p151, %p152
      %s155 = sadd.s32 %s154, 1
      %p158 = scmp.eq.s32.totalorder %s17, 1
      %p159 = scmp.ne.s32.totalorder %s154, %s156
      %p160 = scmp.eq.s32.totalorder %s17, 0
      %p161 = por %p159, %p160
      %p162 = scmp.ne.s32.totalorder %s154, %s156
      %p163 = scmp.eq.s32.totalorder %s22, 1
      %p164 = por %p162, %p163
      %p165 = scmp.ne.s32.totalorder %s156, %s157
      %p166 = scmp.eq.s32.totalorder %s22, 0
      %p167 = por %p165, %p166
      %p168 = scmp.ne.s32.totalorder %s156, %s157
      %p169 = scmp.eq.s32.totalorder %s23, 1
      %p170 = por %p168, %p169
      %p172 = scmp.ne.s32.totalorder %s157, %s171
      %p173 = scmp.eq.s32.totalorder %s23, 0
      %p174 = por %p172, %p173
      %s176 = sadd.s32 %s175, 1
      %p179 = scmp.eq.s32.totalorder %s17, 1
      %p180 = scmp.ne.s32.totalorder %s175, %s177
      %p181 = scmp.eq.s32.totalorder %s17, 0
      %p182 = por %p180, %p181
      %p183 = scmp.ne.s32.totalorder %s175, %s177
      %p184 = scmp.eq.s32.totalorder %s22, 1
      %p185 = por %p183, %p184
      %p186 = scmp.ne.s32.totalorder %s177, %s178
      %p187 = scmp.eq.s32.totalorder %s22, 0
      %p188 = por %p186, %p187
      %p189 = scmp.ne.s32.totalorder %s177, %s178
      %p190 = scmp.eq.s32.totalorder %s23, 1
      %p191 = por %p189, %p190
      %p193 = scmp.ne.s32.totalorder %s178, %s192
      %p194 = scmp.eq.s32.totalorder %s23, 0
      %p195 = por %p193, %p194
      %s197 = sadd.s32 %s196, 1
      %p200 = scmp.eq.s32.totalorder %s17, 1
      %p201 = scmp.ne.s32.totalorder %s196, %s198
      %p202 = scmp.eq.s32.totalorder %s17, 0
      %p203 = por %p201, %p202
      %p204 = scmp.ne.s32.totalorder %s196, %s198
      %p205 = scmp.eq.s32.totalorder %s22, 1
      %p206 = por %p204, %p205
      %p207 = scmp.ne.s32.totalorder %s198, %s199
      %p208 = scmp.eq.s32.totalorder %s22, 0
      %p209 = por %p207, %p208
      %p210 = scmp.ne.s32.totalorder %s198, %s199
      %p211 = scmp.eq.s32.totalorder %s23, 1
      %p212 = por %p210, %p211
      %p214 = scmp.ne.s32.totalorder %s199, %s213
      %p215 = scmp.eq.s32.totalorder %s23, 0
      %p216 = por %p214, %p215
      %s217 = ssub.s32 %s24, %s36
      %s218 = ssub.s32 %s25, %s32
      %s219 = sor.u32 %s217, %s218
      %p220 = scmp.eq.s32.totalorder %s219, 0
      %s222 = sadd.s32 %s221, 1
      %s223 = scalar_select %p220, %s221, %s222
      %p226 = pneg %p220
      %p227 = scmp.eq.s32.totalorder %s17, 1
      %p228 = por %p226, %p227
      %p229 = scmp.ne.s32.totalorder %s221, %s224
      %p230 = scmp.eq.s32.totalorder %s17, 0
      %p231 = por %p229, %p230
      %p232 = scmp.ne.s32.totalorder %s221, %s224
      %p233 = scmp.eq.s32.totalorder %s22, 1
      %p234 = por %p232, %p233
      %p235 = scmp.ne.s32.totalorder %s224, %s225
      %p236 = scmp.eq.s32.totalorder %s22, 0
      %p237 = por %p235, %p236
      %p238 = scmp.ne.s32.totalorder %s224, %s225
      %p239 = scmp.eq.s32.totalorder %s23, 1
      %p240 = por %p238, %p239
      %p242 = scmp.ne.s32.totalorder %s225, %s241
      %p243 = scmp.eq.s32.totalorder %s23, 0
      %p244 = por %p242, %p243
      %p245 = scmp.le.s32.totalorder 1, %s17
      %p246 = scmp.lt.s32.totalorder %s17, 3
      %p247 = pnand %p245, %p246
      %p248 = pneg %p247
      // Predicated region
      $region9: #{tpu_custom_call.1} parent=5 // pred_check
        _
      $region10: #{tpu_custom_call.1} parent=5 // pred_check_branch
        %250 = sbr.rel (%p247) target = $region12
      $region11: #{tpu_custom_call.1} parent=5 // pred_region
        %s251 = ssub.s32 %s17, 1
        // Predicated region
        $region13: #{tpu_custom_call.1} parent=11 // pred_check
          %p252 = pneg %p104
        $region14: #{tpu_custom_call.1} parent=11 // pred_check_branch
          %254 = sbr.rel (%p252) target = $region16
        $region15: #{tpu_custom_call.1} parent=11 // pred_region
          _
        $region16: #{tpu_custom_call.1} parent=11 // pred_fallthru
          _
        // Predicated region
        $region17: #{tpu_custom_call.1} parent=11 // pred_check
          %p255 = pneg %p125
        $region18: #{tpu_custom_call.1} parent=11 // pred_check_branch
          %257 = sbr.rel (%p255) target = $region20
        $region19: #{tpu_custom_call.1} parent=11 // pred_region
          _
        $region20: #{tpu_custom_call.1} parent=11 // pred_fallthru
          _
        // Predicated region
        $region21: #{tpu_custom_call.1} parent=11 // pred_check
          %p258 = pneg %p146
        $region22: #{tpu_custom_call.1} parent=11 // pred_check_branch
          %260 = sbr.rel (%p258) target = $region24
        $region23: #{tpu_custom_call.1} parent=11 // pred_region
          _
        $region24: #{tpu_custom_call.1} parent=11 // pred_fallthru
          _
        // Predicated region
        $region25: #{tpu_custom_call.1} parent=11 // pred_check
          %p261 = pneg %p167
        $region26: #{tpu_custom_call.1} parent=11 // pred_check_branch
          %263 = sbr.rel (%p261) target = $region28
        $region27: #{tpu_custom_call.1} parent=11 // pred_region
          _
        $region28: #{tpu_custom_call.1} parent=11 // pred_fallthru
          _
        // Predicated region
        $region29: #{tpu_custom_call.1} parent=11 // pred_check
          %p264 = pneg %p188
        $region30: #{tpu_custom_call.1} parent=11 // pred_check_branch
          %266 = sbr.rel (%p264) target = $region32
        $region31: #{tpu_custom_call.1} parent=11 // pred_region
          _
        $region32: #{tpu_custom_call.1} parent=11 // pred_fallthru
          _
        // Predicated region
        $region33: #{tpu_custom_call.1} parent=11 // pred_check
          %p267 = pneg %p209
        $region34: #{tpu_custom_call.1} parent=11 // pred_check_branch
          %269 = sbr.rel (%p267) target = $region36
        $region35: #{tpu_custom_call.1} parent=11 // pred_region
          _
        $region36: #{tpu_custom_call.1} parent=11 // pred_fallthru
          _
      $region12: #{tpu_custom_call.1} parent=5 // pred_fallthru
        _
      %p270 = scmp.lt.s32.totalorder %s17, 2
      // Predicated region
      $region37: #{tpu_custom_call.1} parent=5 // pred_check
        %p271 = pneg %p270
      $region38: #{tpu_custom_call.1} parent=5 // pred_check_branch
        %273 = sbr.rel (%p271) target = $region40
      $region39: #{tpu_custom_call.1} parent=5 // pred_region
        // Predicated region
        $region41: #{tpu_custom_call.1} parent=39 // pred_check
          %p274 = pneg %p51
        $region42: #{tpu_custom_call.1} parent=39 // pred_check_branch
          %276 = sbr.rel (%p274) target = $region44
        $region43: #{tpu_custom_call.1} parent=39 // pred_region
          %p277 = scmp.lt.s32.totalorder %s24, 1
          %s278 = scalar_select %p277, %s24, 1
          %p279 = scmp.lt.s32.totalorder %s25, 0
          %s280 = scalar_select %p279, %s25, 0
          %s281 = sadd.s32 %s280, %s278
          %s282 = smul.addr %s281, 8
          %s283 = scalar_lea.vmem %s0, %s282
        $region44: #{tpu_custom_call.1} parent=39 // pred_fallthru
          _
        // Predicated region
        $region45: #{tpu_custom_call.1} parent=39 // pred_check
          %p284 = pneg %p77
        $region46: #{tpu_custom_call.1} parent=39 // pred_check_branch
          %286 = sbr.rel (%p284) target = $region48
        $region47: #{tpu_custom_call.1} parent=39 // pred_region
          %p287 = scmp.lt.s32.totalorder %s24, 1
          %s288 = scalar_select %p287, %s24, 1
          %s289 = smul.addr %s288, 8
          %s290 = scalar_lea.vmem %s1, %s289
        $region48: #{tpu_custom_call.1} parent=39 // pred_fallthru
          _
      $region40: #{tpu_custom_call.1} parent=5 // pred_fallthru
        _
      %p291 = scmp.le.s32.totalorder 1, %s17
      %p292 = scmp.lt.s32.totalorder %s17, 3
      %p293 = pnand %p291, %p292
      %p294 = pneg %p293
      // Predicated region
      $region49: #{tpu_custom_call.1} parent=5 // pred_check
        _
      $region50: #{tpu_custom_call.1} parent=5 // pred_check_branch
        %296 = sbr.rel (%p293) target = $region52
      $region51: #{tpu_custom_call.1} parent=5 // pred_region
        %s297 = ssub.s32 %s17, 1
        %p298 = scmp.lt.s32.totalorder %s26, 1
        %s299 = scalar_select %p298, %s26, 1
        %p300 = scmp.lt.s32.totalorder %s27, 0
        %s301 = scalar_select %p300, %s27, 0
        %s302 = sadd.s32 %s301, %s299
        %s303 = smul.addr %s302, 8
        %s304 = scalar_lea.vmem %s0, %s303
        %p305 = pneg %p57
        %p306 = pneg %p54
        %p307 = scmp.lt.s32.totalorder %s26, 1
        %s308 = scalar_select %p307, %s26, 1
        %s309 = smul.addr %s308, 8
        %s310 = scalar_lea.vmem %s1, %s309
        %p311 = pneg %p83
        %p312 = pneg %p80
        %p313 = pneg %p104
        %p314 = pneg %p101
        %p315 = pneg %p125
        %p316 = pneg %p122
        %p317 = pneg %p146
        %p318 = pneg %p143
        %p319 = pneg %p167
        %p320 = pneg %p164
        %p321 = pneg %p188
        %p322 = pneg %p185
        %p323 = pneg %p209
        %p324 = pneg %p206
        %p325 = pneg %p237
        %p326 = pneg %p234
        %s327 = sand.u32 %s224, 1
        %s328 = scalar_lea.sflag [#allocation4], %s327
        %s329 = sand.u32 %s224, 1
        %s330 = smul.addr %s329, 8
        %s331 = scalar_lea.vmem [#allocation3], %s330
        %p332 = scmp.lt.s32.totalorder %s26, 1
        %s333 = scalar_select %p332, %s26, 1
        %p334 = scmp.lt.s32.totalorder %s27, 0
        %s335 = scalar_select %p334, %s27, 0
        %s336 = sadd.s32 %s335, %s333
        %s337 = smul.addr %s336, 8
        %s338 = scalar_lea.vmem %s0, %s337
        %p339 = scmp.lt.s32.totalorder %s26, 1
        %s340 = scalar_select %p339, %s26, 1
        %s341 = smul.addr %s340, 8
        %s342 = scalar_lea.vmem %s1, %s341
        %v343 = vld [vmem:[%s338] sm:$0xff]
        %v344 = vld [vmem:[%s342] sm:$0xff]
        %vm345 = vcmask 261120
        %346 = vst.msk [vmem:[#allocation2] sm:$0xff] %vm345, 0.0
        loop: start=0, step=1, limit=4
        $region53: #{tpu_custom_call.1} parent=51 // loop_pre_header
          _
        $region54: #{tpu_custom_call.1} parent=51 // loop_header
          %s348 = sphi 0, %s352
          %p349 = scmp.ge.s32.totalorder %s348, 4
        $region55: #{tpu_custom_call.1} parent=51 // loop_header_branch
          %351 = sbr.rel (%p349) target = $region59
        $region56: #{tpu_custom_call.1} parent=51 // loop_body
          %s353 = smul.u32 %s348, 32
          %s354 = scalar_lea.vmem %s2, %s353
          %v355 = vld [vmem:[%s354] sm:$0xff]
          %v356 = vld [vmem:[%s354 + $0x8] sm:$0xff]
          %v357 = vld [vmem:[%s354 + $0x10] sm:$0xff]
          %v358 = vld [vmem:[%s354 + $0x18] sm:$0xff]
          %s359 = scalar_lea.vmem %s3, %s353
          %v360 = vld [vmem:[%s359] sm:$0xff]
          %v361 = vld [vmem:[%s359 + $0x8] sm:$0xff]
          %v362 = vld [vmem:[%s359 + $0x10] sm:$0xff]
          %v363 = vld [vmem:[%s359 + $0x18] sm:$0xff]
          %s364 = scalar_lea.vmem %s4, %s353
          %v365 = vld [vmem:[%s364] sm:$0xff]
          %v366 = vld [vmem:[%s364 + $0x8] sm:$0xff]
          %v367 = vld [vmem:[%s364 + $0x10] sm:$0xff]
          %v368 = vld [vmem:[%s364 + $0x18] sm:$0xff]
          %s369 = smul.u32 %s348, 8
          %s370 = scalar_lea.vmem %s5, %s369
          %v371 = vld [vmem:[%s370] sm:$0xff]
          %s372 = smul.u32 %s348, 4
          %s373 = scalar_lea.vmem %s6, %s372
          %v374 = vld [vmem:[%s373] sm:$0x7]
          %v375 = vlaneseq
          %v376 = vshrl.u32 %v375, 7
          %v377 = vsub.s32 0, %v376
          %v378 = vrot.slane %v374, %v377
          %v380 = vsel %vm345, %v343, 0
          %382 = vmatprep.subr.mxu0 0.0
          %383 = vmatpush1.msra.mxu0 %v355
          %384 = vmatprep.subr.mxu0 0.0
          %385 = vmatpush1.msra.mxu0 %v356
          %386 = vmatprep.subr.mxu0 0.0
          %387 = vmatpush1.msra.mxu0 %v357
          %388 = vmatprep.subr.mxu0 0.0
          %389 = vmatpush1.msra.mxu0 %v358
          %390 = vmatprep.subr.mxu0 0.0
          %391 = vmatpush1.msra.mxu0 0.0
          %392 = vmatprep.subr.mxu0 0.0
          %393 = vmatpush1.msra.mxu0 0.0
          %394 = vmatprep.subr.mxu0 0.0
          %395 = vmatpush1.msra.mxu0 0.0
          %396 = vmatprep.subr.mxu0 0.0
          %397 = vmatpush1.msra.mxu0 0.0
          %398 = vmatprep.subr.mxu0 0.0
          %399 = vmatpush1.msra.mxu0 0.0
          %400 = vmatprep.subr.mxu0 0.0
          %401 = vmatpush1.msra.mxu0 0.0
          %402 = vmatprep.subr.mxu0 0.0
          %403 = vmatpush1.msra.mxu0 0.0
          %404 = vmatprep.subr.mxu0 0.0
          %405 = vmatpush1.msra.mxu0 0.0
          %406 = vmatprep.subr.mxu0 0.0
          %407 = vmatpush1.msra.mxu0 0.0
          %408 = vmatprep.subr.mxu0 0.0
          %409 = vmatpush1.msra.mxu0 0.0
          %410 = vmatprep.subr.mxu0 0.0
          %411 = vmatpush1.msra.mxu0 0.0
          %412 = vmatprep.subr.mxu0 0.0
          %413 = vmatpush1.msra.mxu0 0.0
          %414 = vmatprep.subr.mxu0 0.0
          %415 = vmatpush1.msra.mxu0 0.0
          %416 = vmatprep.subr.mxu0 0.0
          %417 = vmatpush1.msra.mxu0 0.0
          %418 = vmatprep.subr.mxu0 0.0
          %419 = vmatpush1.msra.mxu0 0.0
          %420 = vmatprep.subr.mxu0 0.0
          %421 = vmatpush1.msra.mxu0 0.0
          %422 = vmatprep.subr.mxu0 0.0
          %423 = vmatpush1.msra.mxu0 0.0
          %424 = vmatprep.subr.mxu0 0.0
          %425 = vmatpush1.msra.mxu0 0.0
          %426 = vmatprep.subr.mxu0 0.0
          %427 = vmatpush1.msra.mxu0 0.0
          %428 = vmatprep.subr.mxu0 0.0
          %429 = vmatpush1.msra.mxu0 0.0
          %430 = vmatprep.subr.mxu0 0.0
          %431 = vmatpush1.msra.mxu0 0.0
          %432 = vmatprep.subr.mxu0 0.0
          %433 = vmatpush1.msra.mxu0 0.0
          %434 = vmatprep.subr.mxu0 0.0
          %435 = vmatpush1.msra.mxu0 0.0
          %436 = vmatprep.subr.mxu0 0.0
          %437 = vmatpush1.msra.mxu0 0.0
          %438 = vmatprep.subr.mxu0 0.0
          %439 = vmatpush1.msra.mxu0 0.0
          %440 = vmatprep.subr.mxu0 0.0
          %441 = vmatpush1.msra.mxu0 0.0
          %442 = vmatprep.subr.mxu0 0.0
          %443 = vmatpush1.msra.mxu0 0.0
          %444 = vmatprep.subr.mxu0 0.0
          %445 = vmatpush1.msra.mxu0 0.0
          %446 = vmatprep.mubr.f32.mxu0 0.0
          %447 = vmatmul.mubr.f32.gmra.mrb[0].mxu0 %v380
          %v448 = vpop.f32.mrb[0].mxu0
          %v449 = vadd.f32 %v378, %v448
          %v450 = vpop.f32.mrb[0].mxu0
          %451 = vdwg.mxu0
          %v452 = vlaneseq
          %v453 = vshrl.u32 %v452, 7
          %v454 = vsub.s32 1, %v453
          %v455 = vrot.slane %v374, %v454
          %v457 = vsel %vm345, %v344, 0
          %459 = vmatprep.subr.mxu0 0.0
          %460 = vmatpush1.msra.mxu0 %v360
          %461 = vmatprep.subr.mxu0 0.0
          %462 = vmatpush1.msra.mxu0 %v361
          %463 = vmatprep.subr.mxu0 0.0
          %464 = vmatpush1.msra.mxu0 %v362
          %465 = vmatprep.subr.mxu0 0.0
          %466 = vmatpush1.msra.mxu0 %v363
          %467 = vmatprep.subr.mxu0 0.0
          %468 = vmatpush1.msra.mxu0 0.0
          %469 = vmatprep.subr.mxu0 0.0
          %470 = vmatpush1.msra.mxu0 0.0
          %471 = vmatprep.subr.mxu0 0.0
          %472 = vmatpush1.msra.mxu0 0.0
          %473 = vmatprep.subr.mxu0 0.0
          %474 = vmatpush1.msra.mxu0 0.0
          %475 = vmatprep.subr.mxu0 0.0
          %476 = vmatpush1.msra.mxu0 0.0
          %477 = vmatprep.subr.mxu0 0.0
          %478 = vmatpush1.msra.mxu0 0.0
          %479 = vmatprep.subr.mxu0 0.0
          %480 = vmatpush1.msra.mxu0 0.0
          %481 = vmatprep.subr.mxu0 0.0
          %482 = vmatpush1.msra.mxu0 0.0
          %483 = vmatprep.subr.mxu0 0.0
          %484 = vmatpush1.msra.mxu0 0.0
          %485 = vmatprep.subr.mxu0 0.0
          %486 = vmatpush1.msra.mxu0 0.0
          %487 = vmatprep.subr.mxu0 0.0
          %488 = vmatpush1.msra.mxu0 0.0
          %489 = vmatprep.subr.mxu0 0.0
          %490 = vmatpush1.msra.mxu0 0.0
          %491 = vmatprep.subr.mxu0 0.0
          %492 = vmatpush1.msra.mxu0 0.0
          %493 = vmatprep.subr.mxu0 0.0
          %494 = vmatpush1.msra.mxu0 0.0
          %495 = vmatprep.subr.mxu0 0.0
          %496 = vmatpush1.msra.mxu0 0.0
          %497 = vmatprep.subr.mxu0 0.0
          %498 = vmatpush1.msra.mxu0 0.0
          %499 = vmatprep.subr.mxu0 0.0
          %500 = vmatpush1.msra.mxu0 0.0
          %501 = vmatprep.subr.mxu0 0.0
          %502 = vmatpush1.msra.mxu0 0.0
          %503 = vmatprep.subr.mxu0 0.0
          %504 = vmatpush1.msra.mxu0 0.0
          %505 = vmatprep.subr.mxu0 0.0
          %506 = vmatpush1.msra.mxu0 0.0
          %507 = vmatprep.subr.mxu0 0.0
          %508 = vmatpush1.msra.mxu0 0.0
          %509 = vmatprep.subr.mxu0 0.0
          %510 = vmatpush1.msra.mxu0 0.0
          %511 = vmatprep.subr.mxu0 0.0
          %512 = vmatpush1.msra.mxu0 0.0
          %513 = vmatprep.subr.mxu0 0.0
          %514 = vmatpush1.msra.mxu0 0.0
          %515 = vmatprep.subr.mxu0 0.0
          %516 = vmatpush1.msra.mxu0 0.0
          %517 = vmatprep.subr.mxu0 0.0
          %518 = vmatpush1.msra.mxu0 0.0
          %519 = vmatprep.subr.mxu0 0.0
          %520 = vmatpush1.msra.mxu0 0.0
          %521 = vmatprep.subr.mxu0 0.0
          %522 = vmatpush1.msra.mxu0 0.0
          %523 = vmatprep.mubr.f32.mxu0 0.0
          %524 = vmatmul.mubr.f32.gmra.mrb[0].mxu0 %v457
          %v525 = vpop.f32.mrb[0].mxu0
          %v526 = vadd.f32 %v455, %v525
          %v527 = vpop.f32.mrb[0].mxu0
          %528 = vdwg.mxu0
          %v529 = vlaneseq
          %v530 = vshrl.u32 %v529, 7
          %v531 = vsub.s32 2, %v530
          %v532 = vrot.slane %v374, %v531
          %533 = vmatprep.subr.mxu0 0.0
          %534 = vmatpush1.msra.mxu0 %v365
          %535 = vmatprep.subr.mxu0 0.0
          %536 = vmatpush1.msra.mxu0 %v366
          %537 = vmatprep.subr.mxu0 0.0
          %538 = vmatpush1.msra.mxu0 %v367
          %539 = vmatprep.subr.mxu0 0.0
          %540 = vmatpush1.msra.mxu0 %v368
          %541 = vmatprep.subr.mxu0 0.0
          %542 = vmatpush1.msra.mxu0 0.0
          %543 = vmatprep.subr.mxu0 0.0
          %544 = vmatpush1.msra.mxu0 0.0
          %545 = vmatprep.subr.mxu0 0.0
          %546 = vmatpush1.msra.mxu0 0.0
          %547 = vmatprep.subr.mxu0 0.0
          %548 = vmatpush1.msra.mxu0 0.0
          %549 = vmatprep.subr.mxu0 0.0
          %550 = vmatpush1.msra.mxu0 0.0
          %551 = vmatprep.subr.mxu0 0.0
          %552 = vmatpush1.msra.mxu0 0.0
          %553 = vmatprep.subr.mxu0 0.0
          %554 = vmatpush1.msra.mxu0 0.0
          %555 = vmatprep.subr.mxu0 0.0
          %556 = vmatpush1.msra.mxu0 0.0
          %557 = vmatprep.subr.mxu0 0.0
          %558 = vmatpush1.msra.mxu0 0.0
          %559 = vmatprep.subr.mxu0 0.0
          %560 = vmatpush1.msra.mxu0 0.0
          %561 = vmatprep.subr.mxu0 0.0
          %562 = vmatpush1.msra.mxu0 0.0
          %563 = vmatprep.subr.mxu0 0.0
          %564 = vmatpush1.msra.mxu0 0.0
          %565 = vmatprep.subr.mxu0 0.0
          %566 = vmatpush1.msra.mxu0 0.0
          %567 = vmatprep.subr.mxu0 0.0
          %568 = vmatpush1.msra.mxu0 0.0
          %569 = vmatprep.subr.mxu0 0.0
          %570 = vmatpush1.msra.mxu0 0.0
          %571 = vmatprep.subr.mxu0 0.0
          %572 = vmatpush1.msra.mxu0 0.0
          %573 = vmatprep.subr.mxu0 0.0
          %574 = vmatpush1.msra.mxu0 0.0
          %575 = vmatprep.subr.mxu0 0.0
          %576 = vmatpush1.msra.mxu0 0.0
          %577 = vmatprep.subr.mxu0 0.0
          %578 = vmatpush1.msra.mxu0 0.0
          %579 = vmatprep.subr.mxu0 0.0
          %580 = vmatpush1.msra.mxu0 0.0
          %581 = vmatprep.subr.mxu0 0.0
          %582 = vmatpush1.msra.mxu0 0.0
          %583 = vmatprep.subr.mxu0 0.0
          %584 = vmatpush1.msra.mxu0 0.0
          %585 = vmatprep.subr.mxu0 0.0
          %586 = vmatpush1.msra.mxu0 0.0
          %587 = vmatprep.subr.mxu0 0.0
          %588 = vmatpush1.msra.mxu0 0.0
          %589 = vmatprep.subr.mxu0 0.0
          %590 = vmatpush1.msra.mxu0 0.0
          %591 = vmatprep.subr.mxu0 0.0
          %592 = vmatpush1.msra.mxu0 0.0
          %593 = vmatprep.subr.mxu0 0.0
          %594 = vmatpush1.msra.mxu0 0.0
          %595 = vmatprep.subr.mxu0 0.0
          %596 = vmatpush1.msra.mxu0 0.0
          %597 = vmatprep.mubr.f32.mxu0 0.0
          %598 = vmatmul.mubr.f32.gmra.mrb[0].mxu0 %v457
          %v599 = vpop.f32.mrb[0].mxu0
          %v600 = vadd.f32 %v532, %v599
          %v601 = vpop.f32.mrb[0].mxu0
          %602 = vdwg.mxu0
          %v603 = vmul.f32 %v449, 0.35355338
          %vm604 = vcmask 64512
          %v606 = vsel %vm604, %v603, 0
          %v609 = vsel %vm604, %v526, 0
          %611 = vmatprep.subr.mxu0 0.0
          %612 = vmatpush1.xpose.msra.mxu0 %v609
          %613 = vmatprep.subr.mxu0 0.0
          %614 = vmatpush1.xpose.msra.mxu0 0.0
          %615 = vmatprep.subr.mxu0 0.0
          %616 = vmatpush1.xpose.msra.mxu0 0.0
          %617 = vmatprep.subr.mxu0 0.0
          %618 = vmatpush1.xpose.msra.mxu0 0.0
          %619 = vmatprep.subr.mxu0 0.0
          %620 = vmatpush1.xpose.msra.mxu0 0.0
          %621 = vmatprep.subr.mxu0 0.0
          %622 = vmatpush1.xpose.msra.mxu0 0.0
          %623 = vmatprep.subr.mxu0 0.0
          %624 = vmatpush1.xpose.msra.mxu0 0.0
          %625 = vmatprep.subr.mxu0 0.0
          %626 = vmatpush1.xpose.msra.mxu0 0.0
          %627 = vmatprep.subr.mxu0 0.0
          %628 = vmatpush1.xpose.msra.mxu0 0.0
          %629 = vmatprep.subr.mxu0 0.0
          %630 = vmatpush1.xpose.msra.mxu0 0.0
          %631 = vmatprep.subr.mxu0 0.0
          %632 = vmatpush1.xpose.msra.mxu0 0.0
          %633 = vmatprep.subr.mxu0 0.0
          %634 = vmatpush1.xpose.msra.mxu0 0.0
          %635 = vmatprep.subr.mxu0 0.0
          %636 = vmatpush1.xpose.msra.mxu0 0.0
          %637 = vmatprep.subr.mxu0 0.0
          %638 = vmatpush1.xpose.msra.mxu0 0.0
          %639 = vmatprep.subr.mxu0 0.0
          %640 = vmatpush1.xpose.msra.mxu0 0.0
          %641 = vmatprep.subr.mxu0 0.0
          %642 = vmatpush1.xpose.msra.mxu0 0.0
          %643 = vmatprep.subr.mxu0 0.0
          %644 = vmatpush1.xpose.msra.mxu0 0.0
          %645 = vmatprep.subr.mxu0 0.0
          %646 = vmatpush1.xpose.msra.mxu0 0.0
          %647 = vmatprep.subr.mxu0 0.0
          %648 = vmatpush1.xpose.msra.mxu0 0.0
          %649 = vmatprep.subr.mxu0 0.0
          %650 = vmatpush1.xpose.msra.mxu0 0.0
          %651 = vmatprep.subr.mxu0 0.0
          %652 = vmatpush1.xpose.msra.mxu0 0.0
          %653 = vmatprep.subr.mxu0 0.0
          %654 = vmatpush1.xpose.msra.mxu0 0.0
          %655 = vmatprep.subr.mxu0 0.0
          %656 = vmatpush1.xpose.msra.mxu0 0.0
          %657 = vmatprep.subr.mxu0 0.0
          %658 = vmatpush1.xpose.msra.mxu0 0.0
          %659 = vmatprep.subr.mxu0 0.0
          %660 = vmatpush1.xpose.msra.mxu0 0.0
          %661 = vmatprep.subr.mxu0 0.0
          %662 = vmatpush1.xpose.msra.mxu0 0.0
          %663 = vmatprep.subr.mxu0 0.0
          %664 = vmatpush1.xpose.msra.mxu0 0.0
          %665 = vmatprep.subr.mxu0 0.0
          %666 = vmatpush1.xpose.msra.mxu0 0.0
          %667 = vmatprep.subr.mxu0 0.0
          %668 = vmatpush1.xpose.msra.mxu0 0.0
          %669 = vmatprep.subr.mxu0 0.0
          %670 = vmatpush1.xpose.msra.mxu0 0.0
          %671 = vmatprep.subr.mxu0 0.0
          %672 = vmatpush1.xpose.msra.mxu0 0.0
          %673 = vmatprep.subr.mxu0 0.0
          %674 = vmatpush1.xpose.msra.mxu0 0.0
          %675 = vmatprep.mubr.f32.mxu0 0.0
          %676 = vmatmul.mubr.f32.gmra.mrb[0].mxu0 %v606
          %v677 = vpop.f32.mrb[0].mxu0
          %v678 = vadd.f32 0.0, %v677
          %v679 = vpop.f32.mrb[0].mxu0
          %680 = vdwg.mxu0
          %v681 = vsel %vm604, %v678, -inf
          %682 = vmax.xlane.f32.xlu0 %v681
          %v683 = vpop.xlane.xlu0 %682
          %v684 = vsub.f32 %v678, %v683
          %v685 = vmul.f32 %v684, 1.442695
          %v686 = vpow.pop %v685
          %v687 = vsel %vm604, %v686, 0.0
          %688 = vadd.xlane.f32.xlu0 %v687
          %v689 = vpop.xlane.xlu0 %688
          %v690 = vrcp.pop %v689
          %v692 = vsel %vm604, %v686, 0
          %694 = vmatprep.subr.mxu0 0.0
          %695 = vmatpush1.msra.mxu0 %v600
          %696 = vmatprep.subr.mxu0 0.0
          %697 = vmatpush1.msra.mxu0 0.0
          %698 = vmatprep.subr.mxu0 0.0
          %699 = vmatpush1.msra.mxu0 0.0
          %700 = vmatprep.subr.mxu0 0.0
          %701 = vmatpush1.msra.mxu0 0.0
          %702 = vmatprep.subr.mxu0 0.0
          %703 = vmatpush1.msra.mxu0 0.0
          %704 = vmatprep.subr.mxu0 0.0
          %705 = vmatpush1.msra.mxu0 0.0
          %706 = vmatprep.subr.mxu0 0.0
          %707 = vmatpush1.msra.mxu0 0.0
          %708 = vmatprep.subr.mxu0 0.0
          %709 = vmatpush1.msra.mxu0 0.0
          %710 = vmatprep.subr.mxu0 0.0
          %711 = vmatpush1.msra.mxu0 0.0
          %712 = vmatprep.subr.mxu0 0.0
          %713 = vmatpush1.msra.mxu0 0.0
          %714 = vmatprep.subr.mxu0 0.0
          %715 = vmatpush1.msra.mxu0 0.0
          %716 = vmatprep.subr.mxu0 0.0
          %717 = vmatpush1.msra.mxu0 0.0
          %718 = vmatprep.subr.mxu0 0.0
          %719 = vmatpush1.msra.mxu0 0.0
          %720 = vmatprep.subr.mxu0 0.0
          %721 = vmatpush1.msra.mxu0 0.0
          %722 = vmatprep.subr.mxu0 0.0
          %723 = vmatpush1.msra.mxu0 0.0
          %724 = vmatprep.subr.mxu0 0.0
          %725 = vmatpush1.msra.mxu0 0.0
          %726 = vmatprep.subr.mxu0 0.0
          %727 = vmatpush1.msra.mxu0 0.0
          %728 = vmatprep.subr.mxu0 0.0
          %729 = vmatpush1.msra.mxu0 0.0
          %730 = vmatprep.subr.mxu0 0.0
          %731 = vmatpush1.msra.mxu0 0.0
          %732 = vmatprep.subr.mxu0 0.0
          %733 = vmatpush1.msra.mxu0 0.0
          %734 = vmatprep.subr.mxu0 0.0
          %735 = vmatpush1.msra.mxu0 0.0
          %736 = vmatprep.subr.mxu0 0.0
          %737 = vmatpush1.msra.mxu0 0.0
          %738 = vmatprep.subr.mxu0 0.0
          %739 = vmatpush1.msra.mxu0 0.0
          %740 = vmatprep.subr.mxu0 0.0
          %741 = vmatpush1.msra.mxu0 0.0
          %742 = vmatprep.subr.mxu0 0.0
          %743 = vmatpush1.msra.mxu0 0.0
          %744 = vmatprep.subr.mxu0 0.0
          %745 = vmatpush1.msra.mxu0 0.0
          %746 = vmatprep.subr.mxu0 0.0
          %747 = vmatpush1.msra.mxu0 0.0
          %748 = vmatprep.subr.mxu0 0.0
          %749 = vmatpush1.msra.mxu0 0.0
          %750 = vmatprep.subr.mxu0 0.0
          %751 = vmatpush1.msra.mxu0 0.0
          %752 = vmatprep.subr.mxu0 0.0
          %753 = vmatpush1.msra.mxu0 0.0
          %754 = vmatprep.subr.mxu0 0.0
          %755 = vmatpush1.msra.mxu0 0.0
          %756 = vmatprep.subr.mxu0 0.0
          %757 = vmatpush1.msra.mxu0 0.0
          %758 = vmatprep.mubr.f32.mxu0 0.0
          %759 = vmatmul.mubr.f32.gmra.mrb[0].mxu0 %v692
          %v760 = vpop.f32.mrb[0].mxu0
          %v761 = vadd.f32 0.0, %v760
          %v762 = vpop.f32.mrb[0].mxu0
          %763 = vdwg.mxu0
          %v764 = vmul.f32 %v761, %v690
          %v765 = vld [vmem:[#allocation2] sm:$0xff]
          %v767 = vsel %vm604, %v764, 0
          %769 = vmatprep.subr.mxu0 0.0
          %770 = vmatpush1.msra.mxu0 %v371
          %771 = vmatprep.subr.mxu0 0.0
          %772 = vmatpush1.msra.mxu0 0.0
          %773 = vmatprep.subr.mxu0 0.0
          %774 = vmatpush1.msra.mxu0 0.0
          %775 = vmatprep.subr.mxu0 0.0
          %776 = vmatpush1.msra.mxu0 0.0
          %777 = vmatprep.subr.mxu0 0.0
          %778 = vmatpush1.msra.mxu0 0.0
          %779 = vmatprep.subr.mxu0 0.0
          %780 = vmatpush1.msra.mxu0 0.0
          %781 = vmatprep.subr.mxu0 0.0
          %782 = vmatpush1.msra.mxu0 0.0
          %783 = vmatprep.subr.mxu0 0.0
          %784 = vmatpush1.msra.mxu0 0.0
          %785 = vmatprep.subr.mxu0 0.0
          %786 = vmatpush1.msra.mxu0 0.0
          %787 = vmatprep.subr.mxu0 0.0
          %788 = vmatpush1.msra.mxu0 0.0
          %789 = vmatprep.subr.mxu0 0.0
          %790 = vmatpush1.msra.mxu0 0.0
          %791 = vmatprep.subr.mxu0 0.0
          %792 = vmatpush1.msra.mxu0 0.0
          %793 = vmatprep.subr.mxu0 0.0
          %794 = vmatpush1.msra.mxu0 0.0
          %795 = vmatprep.subr.mxu0 0.0
          %796 = vmatpush1.msra.mxu0 0.0
          %797 = vmatprep.subr.mxu0 0.0
          %798 = vmatpush1.msra.mxu0 0.0
          %799 = vmatprep.subr.mxu0 0.0
          %800 = vmatpush1.msra.mxu0 0.0
          %801 = vmatprep.subr.mxu0 0.0
          %802 = vmatpush1.msra.mxu0 0.0
          %803 = vmatprep.subr.mxu0 0.0
          %804 = vmatpush1.msra.mxu0 0.0
          %805 = vmatprep.subr.mxu0 0.0
          %806 = vmatpush1.msra.mxu0 0.0
          %807 = vmatprep.subr.mxu0 0.0
          %808 = vmatpush1.msra.mxu0 0.0
          %809 = vmatprep.subr.mxu0 0.0
          %810 = vmatpush1.msra.mxu0 0.0
          %811 = vmatprep.subr.mxu0 0.0
          %812 = vmatpush1.msra.mxu0 0.0
          %813 = vmatprep.subr.mxu0 0.0
          %814 = vmatpush1.msra.mxu0 0.0
          %815 = vmatprep.subr.mxu0 0.0
          %816 = vmatpush1.msra.mxu0 0.0
          %817 = vmatprep.subr.mxu0 0.0
          %818 = vmatpush1.msra.mxu0 0.0
          %819 = vmatprep.subr.mxu0 0.0
          %820 = vmatpush1.msra.mxu0 0.0
          %821 = vmatprep.subr.mxu0 0.0
          %822 = vmatpush1.msra.mxu0 0.0
          %823 = vmatprep.subr.mxu0 0.0
          %824 = vmatpush1.msra.mxu0 0.0
          %825 = vmatprep.subr.mxu0 0.0
          %826 = vmatpush1.msra.mxu0 0.0
          %827 = vmatprep.subr.mxu0 0.0
          %828 = vmatpush1.msra.mxu0 0.0
          %829 = vmatprep.subr.mxu0 0.0
          %830 = vmatpush1.msra.mxu0 0.0
          %831 = vmatprep.subr.mxu0 0.0
          %832 = vmatpush1.msra.mxu0 0.0
          %833 = vmatprep.mubr.f32.mxu0 0.0
          %834 = vmatmul.mubr.f32.gmra.mrb[0].mxu0 %v767
          %v835 = vpop.f32.mrb[0].mxu0
          %v836 = vadd.f32 0.0, %v835
          %v837 = vpop.f32.mrb[0].mxu0
          %838 = vdwg.mxu0
          %v839 = vadd.f32 %v765, %v836
          %840 = vst.msk [vmem:[#allocation2] sm:$0xff] %vm345, %v839
        $region57: #{tpu_custom_call.1} parent=51 // loop_footer
          %s352 = sadd.s32 1, %s348
        $region58: #{tpu_custom_call.1} parent=51 // loop_footer_branch
          %347 = sbr.rel target = $region54
        $region59: #{tpu_custom_call.1} parent=51 // loop_exit
          _
        %v841 = vld [vmem:[%s7] sm:$0x1]
        %v842 = vld [vmem:[%s7 + $0x1] sm:$0x1]
        %v843 = vld [vmem:[%s7 + $0x2] sm:$0x1]
        %v844 = vld [vmem:[#allocation2] sm:$0xff]
        %v845 = vadd.f32 %v343, %v844
        %v846 = vlaneseq
        %v847 = vshrl.u32 %v846, 7
        %v848 = vsub.s32 0, %v847
        %v849 = vrot.slane %v841, %v848
        %v850 = vadd.f32 %v845, %v849
        %v851 = vsel %vm345, %v850, 0.0
        %852 = vadd.xlane.f32.xlu0 %v851
        %v853 = vpop.xlane.xlu0 %852
        %v854 = vrcp.pop 32.0
        %v855 = vmul.f32 %v853, %v854
        %v856 = vsub.f32 %v850, %v855
        %v857 = vmul.f32 %v856, %v856
        %v858 = vsel %vm345, %v857, 0.0
        %859 = vadd.xlane.f32.xlu0 %v858
        %v860 = vpop.xlane.xlu0 %859
        %v861 = vmul.f32 %v860, %v854
        %v862 = vadd.f32 %v861, 1e-05
        %v863 = vrsqrt.pop %v862
        %v864 = vmul.f32 %v856, %v863
        %v865 = vlaneseq
        %v866 = vshrl.u32 %v865, 7
        %v867 = vsub.s32 0, %v866
        %v868 = vrot.slane %v842, %v867
        %v869 = vmul.f32 %v864, %v868
        %v870 = vlaneseq
        %v871 = vshrl.u32 %v870, 7
        %v872 = vsub.s32 0, %v871
        %v873 = vrot.slane %v843, %v872
        %v874 = vadd.f32 %v869, %v873
        %875 = vst.msk [vmem:[%s331] sm:$0xff] %vm345, %v874
        %s876 = sand.u32 %s224, 1
        %s877 = scalar_lea.sflag [#allocation4], %s876
        %s878 = sand.u32 %s224, 1
        %s879 = smul.addr %s878, 8
        %s880 = scalar_lea.vmem [#allocation3], %s879
        // Predicated region
        $region60: #{tpu_custom_call.1} parent=51 // pred_check
          %p881 = pneg %p234
        $region61: #{tpu_custom_call.1} parent=51 // pred_check_branch
          %883 = sbr.rel (%p881) target = $region63
        $region62: #{tpu_custom_call.1} parent=51 // pred_region
          %s885 = ssub.s32 128, 128
          %886 = vsyncadd %s877, %s885
          %s887 = sadd.s32 %s27, %s26
          %s888 = smul.addr %s887, 128
          %s889 = scalar_lea.hbm %s8, %s888
          %s891 = sshll.u32 %s880, 4
          %s892 = int_to_ptr.vmem [resolvable:$true] %s891
          %894 = dma.vmem_to_hbm [thread:$0]  %s892, 128, %s889, %s877
        $region63: #{tpu_custom_call.1} parent=51 // pred_fallthru
          _
      $region52: #{tpu_custom_call.1} parent=5 // pred_fallthru
        _
      %p895 = scmp.le.s32.totalorder 2, %s17
      // Predicated region
      $region64: #{tpu_custom_call.1} parent=5 // pred_check
        %p896 = pneg %p895
      $region65: #{tpu_custom_call.1} parent=5 // pred_check_branch
        %898 = sbr.rel (%p896) target = $region67
      $region66: #{tpu_custom_call.1} parent=5 // pred_region
        %s899 = ssub.s32 %s17, 2
        // Predicated region
        $region68: #{tpu_custom_call.1} parent=66 // pred_check
          %p900 = pneg %p240
        $region69: #{tpu_custom_call.1} parent=66 // pred_check_branch
          %902 = sbr.rel (%p900) target = $region71
        $region70: #{tpu_custom_call.1} parent=66 // pred_region
          %s903 = sand.u32 %s225, 1
          %s904 = scalar_lea.sflag [#allocation4], %s903
          %s905 = sand.u32 %s225, 1
          %s906 = smul.addr %s905, 8
          %s907 = scalar_lea.vmem [#allocation3], %s906
          %908 = dma.done %s904, 128
        $region71: #{tpu_custom_call.1} parent=66 // pred_fallthru
          _
      $region67: #{tpu_custom_call.1} parent=5 // pred_fallthru
        _
    $region6: #{tpu_custom_call.1} parent=1 // loop_footer
      %s21 = sadd.s32 1, %s17
    $region7: #{tpu_custom_call.1} parent=1 // loop_footer_branch
      %16 = sbr.rel target = $region3
    $region8: #{tpu_custom_call.1} parent=1 // loop_exit
      _
    %909 = vsyncpa [#allocation4], 1
    %s910 = scalar_lea.sflag [#allocation4], 1
    %911 = vsyncpa %s910, 1

</llo_original>
